<compile_context>
chip_gen: v6e
topology: v6e:2x2x1
jax: 0.10.0
libtpu: 0.0.40
codegen_flags: <defaults>
</compile_context>

<pallas_src>
import functools

import jax
import jax.numpy as jnp
from jax.experimental import pallas as pl
from jax.experimental.pallas import tpu as pltpu


def _round_up(x, m):
    return ((x + m - 1) // m) * m


# ----------------------------------------------------------------------------
# Pallas kernel: one (N-tile, K-tile) step of  out = G @ W + bias
#   g_ref  : (TILE_N, K_TILE)        gathered-feature tile (bf16)
#   w_ref  : (K_pad, Cout_pad)       full folded weight, VMEM-resident once (bf16)
#   b_ref  : (1, Cout_pad)           bias (f32)
#   o_ref  : (TILE_N, Cout_pad)      output tile
#   acc_ref: (TILE_N, Cout_pad) f32  accumulator scratch (lives across the K axis)
# Grid = (N tiles ["parallel"], K tiles ["arbitrary", last]).
# ----------------------------------------------------------------------------
def _sparse_conv_matmul_kernel(g_ref, w_ref, b_ref, o_ref, acc_ref, *, k_tile):
    k = pl.program_id(1)

    @pl.when(k == 0)
    def _():
        acc_ref[...] = jnp.broadcast_to(
            b_ref[...].astype(jnp.float32), acc_ref.shape
        )

    kk = pl.multiple_of(k * k_tile, k_tile)
    w_tile = w_ref[pl.ds(kk, k_tile), :]          # slice current K tile of resident weight
    acc_ref[...] += jnp.dot(
        g_ref[...], w_tile, preferred_element_type=jnp.float32
    )

    @pl.when(k == pl.num_programs(1) - 1)
    def _():
        o_ref[...] = acc_ref[...].astype(o_ref.dtype)


def _pallas_folded_gemm(g2, w2, bias2, *, tile_n, k_tile, out_dtype):
    """g2: (N_pad, K_pad), w2: (K_pad, Cout_pad), bias2: (1, Cout_pad)."""
    n_pad, k_pad = g2.shape
    c_out_pad = w2.shape[1]
    grid = (n_pad // tile_n, k_pad // k_tile)

    kernel = functools.partial(_sparse_conv_matmul_kernel, k_tile=k_tile)

    return pl.pallas_call(
        kernel,
        out_shape=jax.ShapeDtypeStruct((n_pad, c_out_pad), out_dtype),
        grid_spec=pltpu.PrefetchScalarGridSpec(
            num_scalar_prefetch=0,
            grid=grid,
            in_specs=[
                # Gathered feature tile: varies with both grid axes.
                pl.BlockSpec((tile_n, k_tile), lambda i, k: (i, k)),
                # Full folded weight: constant block index -> DMA'd into VMEM once.
                pl.BlockSpec((k_pad, c_out_pad), lambda i, k: (0, 0)),
                # Bias: constant block index.
                pl.BlockSpec((1, c_out_pad), lambda i, k: (0, 0)),
            ],
            out_specs=pl.BlockSpec((tile_n, c_out_pad), lambda i, k: (i, 0)),
            scratch_shapes=[pltpu.VMEM((tile_n, c_out_pad), jnp.float32)],
        ),
        compiler_params=pltpu.CompilerParams(
            dimension_semantics=("parallel", "arbitrary"),
        ),
    )(g2, w2, bias2)


# ----------------------------------------------------------------------------
# Host-side glue: kernel-map construction (gather of neighbor features).
# ----------------------------------------------------------------------------
def _build_gathered(coords, feats, kernel_size, dilation, batch_size, spatial):
    """Returns G: (N, K^3, Cin) where G[p, k] = feats at coord(p) + offset_k (0 if absent)."""
    n, c_in = feats.shape
    k = kernel_size
    half = k // 2

    # Dense hash table: (B, S, S, S) -> row index, -1 if inactive.
    # (Cubic in spatial extent; fine for the demo grid.)
    lookup = jnp.full((batch_size, spatial, spatial, spatial), -1, dtype=jnp.int32)
    lookup = lookup.at[coords[:, 0], coords[:, 1], coords[:, 2], coords[:, 3]].set(
        jnp.arange(n, dtype=jnp.int32)
    )

    offsets = []
    for di in range(k):
        for dj in range(k):
            for dk in range(k):
                offsets.append(
                    ((di - half) * dilation, (dj - half) * dilation, (dk - half) * dilation)
                )

    gathered = []
    b = coords[:, 0]
    ijk = coords[:, 1:4]
    for (di, dj, dk) in offsets:
        q = ijk + jnp.array([di, dj, dk], dtype=coords.dtype)
        valid = jnp.all((q >= 0) & (q < spatial), axis=-1)
        qc = jnp.clip(q, 0, spatial - 1)
        nbr = lookup[b, qc[:, 0], qc[:, 1], qc[:, 2]]
        nbr = jnp.where(valid, nbr, -1)
        g = jnp.where(
            (nbr >= 0)[:, None],
            jnp.take(feats, jnp.maximum(nbr, 0), axis=0),
            jnp.zeros((n, c_in), feats.dtype),
        )
        gathered.append(g)
    return jnp.stack(gathered, axis=1)  # (N, K^3, Cin)


class SparseConv3dPallas:
    """Pallas equivalent of the torchsparse-backed SparseConv3d (stride=1, padding=0)."""

    def __init__(self, in_channels, out_channels, kernel_size, stride=1,
                 dilation=1, bias=True, key=None,
                 compute_dtype=jnp.bfloat16, tile_n=256, k_tile=256):
        assert stride == 1, "only stride=1 (submanifold layout-preserving) implemented"
        assert tile_n % 8 == 0 and k_tile % 128 == 0
        self.in_channels = in_channels
        self.out_channels = out_channels
        self.kernel_size = kernel_size
        self.dilation = dilation
        self.compute_dtype = compute_dtype   # bf16 MXU inputs (f32 accumulation)
        self.tile_n = tile_n                 # rows per output tile ("parallel" axis)
        self.k_tile = k_tile                 # folded-K tile (use 128 on v5e)
        kv = kernel_size ** 3
        key = jax.random.PRNGKey(0) if key is None else key
        kw, kb = jax.random.split(key)
        fan_in = in_channels * kv
        bound = 1.0 / jnp.sqrt(fan_in)
        self.weight = jax.random.uniform(
            kw, (kv, in_channels, out_channels), jnp.float32, -bound, bound
        )
        self.bias = (
            jax.random.uniform(kb, (out_channels,), jnp.float32, -bound, bound)
            if bias else jnp.zeros((out_channels,), jnp.float32)
        )

    def __call__(self, coords, feats, batch_size, spatial):
        n, c_in = feats.shape
        kv = self.kernel_size ** 3
        c_out = self.out_channels

        # Kernel-map gather (plain JAX), then fold K^3 into the contraction axis.
        gathered = _build_gathered(
            coords, feats, self.kernel_size, self.dilation, batch_size, spatial
        )                                           # (N, KV, Cin)
        k_dim = kv * c_in
        g2 = gathered.reshape(n, k_dim)             # (N, KV*Cin)
        w2 = self.weight.reshape(k_dim, c_out)      # (KV*Cin, Cout)

        # Pad to MXU / lane-friendly tiles. All padding is zero -> no contribution.
        k_pad = _round_up(k_dim, self.k_tile)
        n_pad = _round_up(max(n, 8), self.tile_n)
        c_out_pad = _round_up(c_out, 128)

        g2 = jnp.pad(g2, ((0, n_pad - n), (0, k_pad - k_dim))).astype(self.compute_dtype)
        w2 = jnp.pad(w2, ((0, k_pad - k_dim), (0, c_out_pad - c_out))).astype(self.compute_dtype)
        b2 = jnp.pad(self.bias, (0, c_out_pad - c_out)).reshape(1, c_out_pad)

        out = _pallas_folded_gemm(
            g2, w2, b2, tile_n=self.tile_n, k_tile=self.k_tile, out_dtype=feats.dtype
        )
        # Output coords == input coords (stride=1); strip row/channel padding.
        return out[:n, :c_out]


# ----------------------------------------------------------------------------
# Demo / correctness check.
# ----------------------------------------------------------------------------
if __name__ == "__main__":
    key = jax.random.PRNGKey(0)
    k_coords, k_feats, k_mod = jax.random.split(key, 3)

    batch = 2
    spatial = 8          # 8x8x8 voxel grid per batch item
    in_channels = 16
    out_channels = 32
    kernel_size = 3
    n_active = 40        # active voxels (sparse sites)

    # Deterministic unique active coordinates.
    total = batch * spatial * spatial * spatial
    flat = jax.random.permutation(k_coords, total)[:n_active]
    b_idx = flat // (spatial ** 3)
    rem = flat % (spatial ** 3)
    i_idx = rem // (spatial ** 2)
    j_idx = (rem // spatial) % spatial
    k_idx = rem % spatial
    coords = jnp.stack([b_idx, i_idx, j_idx, k_idx], axis=-1).astype(jnp.int32)
    feats = jax.random.normal(k_feats, (n_active, in_channels), jnp.float32)

    conv = SparseConv3dPallas(in_channels, out_channels, kernel_size,
                              stride=1, dilation=1, bias=True, key=k_mod)

    out = conv(coords, feats, batch, spatial)
    out = jax.block_until_ready(out)

    # Pure-JAX reference for the same gather-fold-GEMM semantics (bf16 inputs,
    # f32 accumulation — matching what the kernel computes).
    gathered_ref = _build_gathered(coords, feats, kernel_size, 1, batch, spatial)
    g_ref2 = gathered_ref.reshape(n_active, kernel_size ** 3 * in_channels)
    w_ref2 = conv.weight.reshape(kernel_size ** 3 * in_channels, out_channels)
    ref = jnp.dot(
        g_ref2.astype(jnp.bfloat16), w_ref2.astype(jnp.bfloat16),
        preferred_element_type=jnp.float32,
    ) + conv.bias[None, :]

    assert out.shape == (n_active, out_channels)
    assert bool(jnp.allclose(out, ref, atol=2e-2, rtol=2e-2)), (
        float(jnp.max(jnp.abs(out - ref)))
    )

    print("KERNEL_OK")
</pallas_src>

<mosaic_0001>
module attributes {stable_mosaic.version = 11 : i64} {
  func.func @_sparse_conv_matmul_kernel(%arg0: i32, %arg1: i32, %arg2: memref<256x256xbf16, #tpu.memory_space<vmem>>, %arg3: memref<512x128xbf16, #tpu.memory_space<vmem>>, %arg4: memref<1x128xf32, #tpu.memory_space<vmem>>, %arg5: memref<256x128xf32, #tpu.memory_space<vmem>>, %arg6: memref<256x128xf32, #tpu.memory_space<vmem>>) attributes {dimension_semantics = [#tpu.dimension_semantics<parallel>, #tpu.dimension_semantics<arbitrary>], iteration_bounds = array<i64: 1, 2>, scalar_prefetch = 0 : i64, scratch_operands = 1 : i64, tpu.core_type = #tpu.core_type<tc>, window_params = [{transform_indices = @transform_0, window_bounds = array<i64: 256, 256>}, {pipeline_mode = #tpu.pipeline_mode<synchronous>, transform_indices = @transform_1, window_bounds = array<i64: 512, 128>}, {pipeline_mode = #tpu.pipeline_mode<synchronous>, transform_indices = @transform_2, window_bounds = array<i64: 1, 128>}, {transform_indices = @transform_3, window_bounds = array<i64: 256, 128>}]} {
    %c0_i32 = arith.constant 0 : i32
    %0 = arith.cmpi eq, %arg1, %c0_i32 : i32
    %1 = arith.extui %0 : i1 to i32
    %c0_i32_0 = arith.constant 0 : i32
    %2 = arith.cmpi ne, %1, %c0_i32_0 : i32
    scf.if %2 {
      %c0_8 = arith.constant 0 : index
      %c0_9 = arith.constant 0 : index
      %15 = vector.load %arg4[%c0_8, %c0_9] : memref<1x128xf32, #tpu.memory_space<vmem>>, vector<1x128xf32>
      %16 = vector.shape_cast %15 : vector<1x128xf32> to vector<1x128xf32>
      %17 = vector.broadcast %16 : vector<1x128xf32> to vector<256x128xf32>
      %c0_10 = arith.constant 0 : index
      %c0_11 = arith.constant 0 : index
      %18 = vector.load %arg6[%c0_10, %c0_11] : memref<256x128xf32, #tpu.memory_space<vmem>>, vector<256x128xf32>
      tpu.vector_store %arg6[%c0_10, %c0_11], %17 {strides = array<i32>} : memref<256x128xf32, #tpu.memory_space<vmem>>, vector<256x128xf32>,
    } else {
    }
    %c256_i32 = arith.constant 256 : i32
    %3 = arith.muli %arg1, %c256_i32 : i32
    %4 = tpu.assume_multiple %3, 256 : i32
    %5 = arith.index_cast %4 : i32 to index
    %c0 = arith.constant 0 : index
    %6 = vector.load %arg3[%5, %c0] : memref<512x128xbf16, #tpu.memory_space<vmem>>, vector<256x128xbf16>
    %c0_1 = arith.constant 0 : index
    %c0_2 = arith.constant 0 : index
    %7 = vector.load %arg6[%c0_1, %c0_2] : memref<256x128xf32, #tpu.memory_space<vmem>>, vector<256x128xf32>
    %c0_3 = arith.constant 0 : index
    %c0_4 = arith.constant 0 : index
    %8 = vector.load %arg2[%c0_3, %c0_4] : memref<256x256xbf16, #tpu.memory_space<vmem>>, vector<256x256xbf16>
    %cst = arith.constant dense<0.000000e+00> : vector<256x128xf32>
    %9 = tpu.matmul %8, %6, %cst {dimension_numbers = #tpu.dot_dimension_numbers<[1], [0], [0], [1], [0, 0, 1, 1], [], []>} : vector<256x256xbf16>, vector<256x128xbf16>, vector<256x128xf32> -> vector<256x128xf32>
    %10 = arith.addf %7, %9 : vector<256x128xf32>
    %c0_5 = arith.constant 0 : index
    %c0_6 = arith.constant 0 : index
    %11 = vector.load %arg6[%c0_5, %c0_6] : memref<256x128xf32, #tpu.memory_space<vmem>>, vector<256x128xf32>
    tpu.vector_store %arg6[%c0_5, %c0_6], %10 {strides = array<i32>} : memref<256x128xf32, #tpu.memory_space<vmem>>, vector<256x128xf32>,
    %c1_i32 = arith.constant 1 : i32
    %12 = arith.cmpi eq, %arg1, %c1_i32 : i32
    %13 = arith.extui %12 : i1 to i32
    %c0_i32_7 = arith.constant 0 : i32
    %14 = arith.cmpi ne, %13, %c0_i32_7 : i32
    scf.if %14 {
      %c0_8 = arith.constant 0 : index
      %c0_9 = arith.constant 0 : index
      %15 = vector.load %arg6[%c0_8, %c0_9] : memref<256x128xf32, #tpu.memory_space<vmem>>, vector<256x128xf32>
      %c0_10 = arith.constant 0 : index
      %c0_11 = arith.constant 0 : index
      %16 = vector.load %arg5[%c0_10, %c0_11] : memref<256x128xf32, #tpu.memory_space<vmem>>, vector<256x128xf32>
      tpu.vector_store %arg5[%c0_10, %c0_11], %15 {strides = array<i32>} : memref<256x128xf32, #tpu.memory_space<vmem>>, vector<256x128xf32>,
    } else {
    }
    return
  }
  func.func @transform_0(%arg0: i32, %arg1: i32) -> (i32, i32) {
    %c0_i32 = arith.constant 0 : i32
    return %arg0, %arg1 : i32, i32
  }
  func.func @transform_1(%arg0: i32, %arg1: i32) -> (i32, i32) {
    %c0_i32 = arith.constant 0 : i32
    %c0_i32_0 = arith.constant 0 : i32
    %c0_i32_1 = arith.constant 0 : i32
    return %c0_i32, %c0_i32_0 : i32, i32
  }
  func.func @transform_2(%arg0: i32, %arg1: i32) -> (i32, i32) {
    %c0_i32 = arith.constant 0 : i32
    %c0_i32_0 = arith.constant 0 : i32
    %c0_i32_1 = arith.constant 0 : i32
    return %c0_i32, %c0_i32_0 : i32, i32
  }
  func.func @transform_3(%arg0: i32, %arg1: i32) -> (i32, i32) {
    %c0_i32 = arith.constant 0 : i32
    %c0_i32_0 = arith.constant 0 : i32
    return %arg0, %c0_i32 : i32, i32
  }
}

</mosaic_0001>

<llo_original>
// kernel: tpu_custom_call.1
$region0: #{tpu_custom_call.1}
  #allocation0 [shape = 'u32[]', space=smem, size = 0x4, offset = 0x4, fixed_abs, tag = 'smem constant byte address 0x4 - core index']
  #allocation1 [shape = 'u32[144,128]{1,0:T(1,128)}', space=vmem, size = 0x12000, scoped, tag = 'internal scratch']
  #allocation2 [shape = 'f32[256,128]{1,0:T(8,128)}', space=vmem, size = 0x20000, scoped, tag = 'scratch operand']
  %s0 = inlined_call_operand.hbm [shape: bf16[256,512], index: 0, kind: input, shape index: {}]
  %s1 = inlined_call_operand.hbm [shape: bf16[512,128], index: 1, kind: input, shape index: {}]
  %s2 = inlined_call_operand.vmem [shape: f32[1,128], index: 2, kind: input, shape index: {}]
  %s3 = inlined_call_operand.hbm [shape: f32[256,128], index: 3, kind: output, shape index: {}]
  %s4 = sld [smem:[#allocation0]]
  $region61: #{tpu_custom_call.1} parent=0
    _
  %s6 = ssub.s32 1, %s4
  %s7 = scalar_select 0, %s6, %s4
  $region1: #{tpu_custom_call.1} parent=0
    #allocation3 [shape = 'u8[262144]{0}', space=vmem, size = 0x40000, scoped, tag = 'input window, operand 0']
    #allocation4 [shape = 's32[2]{0}', space=sflag, size = 0x8, scoped, tag = 'scoped memory for tpu_custom_call.1']
    #allocation5 [shape = 's32[2]{0}', space=sflag, size = 0x8, scoped, tag = 'scoped memory for tpu_custom_call.1']
    #allocation6 [shape = 'u8[131072]{0}', space=vmem, size = 0x20000, scoped, tag = 'input window, operand 1, single buffered']
    #allocation7 [shape = 's32[1]{0}', space=sflag, size = 0x4, scoped, tag = 'scoped memory for tpu_custom_call.1']
    #allocation8 [shape = 'u8[131072]{0}', space=vmem, size = 0x20000, scoped, tag = 'output window, operand 0, single buffered']
    %8 = vsyncpa [#allocation4], 0
    %s9 = scalar_lea.sflag [#allocation4], 1
    %10 = vsyncpa %s9, 0
    %11 = vsyncpa [#allocation7], 0
    %12 = vsyncpa [#allocation5], 0
    loop: start=0, step=1, limit=4
    $region2: #{tpu_custom_call.1} parent=1 // loop_pre_header
      _
    $region3: #{tpu_custom_call.1} parent=1 // loop_header
      %s14 = sphi 0, %s18
      %p15 = scmp.ge.s32.totalorder %s14, 4
      %s21 = sphi 0, %s33
      %s22 = sphi 0, %s29
      %s23 = sphi 0, %s21
      %s24 = sphi 0, %s22
      %s25 = sphi 0, %s23
      %s26 = sphi 0, %s24
      %s38 = sphi 0, %s40
      %s41 = sphi 0, %s38
      %s42 = sphi 0, %s41
      %s58 = sphi 0, %s42
      %s62 = sphi 0, %s62
      %s64 = sphi 0, %s62
      %s65 = sphi 0, %s64
      %s79 = sphi 0, %s65
      %s83 = sphi 0, %s83
      %s85 = sphi 0, %s83
      %s86 = sphi 0, %s85
      %s100 = sphi 0, %s86
      %s106 = sphi 0, %s108
      %s109 = sphi 0, %s106
      %s110 = sphi 0, %s109
      %s126 = sphi 0, %s110
    $region4: #{tpu_custom_call.1} parent=1 // loop_header_branch
      %17 = sbr.rel (%p15) target = $region8
    $region5: #{tpu_custom_call.1} parent=1 // loop_body
      %s19 = ssub.s32 %s14, 1
      %s20 = ssub.s32 %s14, 2
      %s27 = sadd.s32 1, %s22
      %p28 = scmp.ge.s32.totalorder %s27, 2
      %s29 = scalar_select %p28, 0, %s27
      %s30 = sadd.s32 1, %s21
      %s31 = scalar_select %p28, %s30, %s21
      %p32 = scmp.ge.s32.totalorder %s31, 1
      %s33 = scalar_select %p32, 0, %s31
      %s34 = ssub.s32 %s21, %s33
      %s35 = ssub.s32 %s22, %s29
      %s36 = sor.u32 %s34, %s35
      %p37 = scmp.eq.s32.totalorder %s36, 0
      %s39 = sadd.s32 %s38, 1
      %s40 = scalar_select %p37, %s38, %s39
      %p43 = pneg %p37
      %p44 = scmp.eq.s32.totalorder %s14, 1
      %p45 = por %p43, %p44
      %p46 = scmp.ne.s32.totalorder %s38, %s41
      %p47 = scmp.eq.s32.totalorder %s14, 0
      %p48 = por %p46, %p47
      %p49 = scmp.ne.s32.totalorder %s38, %s41
      %p50 = scmp.eq.s32.totalorder %s19, 1
      %p51 = por %p49, %p50
      %p52 = scmp.ne.s32.totalorder %s41, %s42
      %p53 = scmp.eq.s32.totalorder %s19, 0
      %p54 = por %p52, %p53
      %p55 = scmp.ne.s32.totalorder %s41, %s42
      %p56 = scmp.eq.s32.totalorder %s20, 1
      %p57 = por %p55, %p56
      %p59 = scmp.ne.s32.totalorder %s42, %s58
      %p60 = scmp.eq.s32.totalorder %s20, 0
      %p61 = por %p59, %p60
      %s63 = sadd.s32 %s62, 1
      %p66 = scmp.eq.s32.totalorder %s14, 1
      %p67 = scmp.ne.s32.totalorder %s62, %s64
      %p68 = scmp.eq.s32.totalorder %s14, 0
      %p69 = por %p67, %p68
      %p70 = scmp.ne.s32.totalorder %s62, %s64
      %p71 = scmp.eq.s32.totalorder %s19, 1
      %p72 = por %p70, %p71
      %p73 = scmp.ne.s32.totalorder %s64, %s65
      %p74 = scmp.eq.s32.totalorder %s19, 0
      %p75 = por %p73, %p74
      %p76 = scmp.ne.s32.totalorder %s64, %s65
      %p77 = scmp.eq.s32.totalorder %s20, 1
      %p78 = por %p76, %p77
      %p80 = scmp.ne.s32.totalorder %s65, %s79
      %p81 = scmp.eq.s32.totalorder %s20, 0
      %p82 = por %p80, %p81
      %s84 = sadd.s32 %s83, 1
      %p87 = scmp.eq.s32.totalorder %s14, 1
      %p88 = scmp.ne.s32.totalorder %s83, %s85
      %p89 = scmp.eq.s32.totalorder %s14, 0
      %p90 = por %p88, %p89
      %p91 = scmp.ne.s32.totalorder %s83, %s85
      %p92 = scmp.eq.s32.totalorder %s19, 1
      %p93 = por %p91, %p92
      %p94 = scmp.ne.s32.totalorder %s85, %s86
      %p95 = scmp.eq.s32.totalorder %s19, 0
      %p96 = por %p94, %p95
      %p97 = scmp.ne.s32.totalorder %s85, %s86
      %p98 = scmp.eq.s32.totalorder %s20, 1
      %p99 = por %p97, %p98
      %p101 = scmp.ne.s32.totalorder %s86, %s100
      %p102 = scmp.eq.s32.totalorder %s20, 0
      %p103 = por %p101, %p102
      %s104 = ssub.s32 %s21, %s33
      %p105 = scmp.eq.s32.totalorder %s104, 0
      %s107 = sadd.s32 %s106, 1
      %s108 = scalar_select %p105, %s106, %s107
      %p111 = pneg %p105
      %p112 = scmp.eq.s32.totalorder %s14, 1
      %p113 = por %p111, %p112
      %p114 = scmp.ne.s32.totalorder %s106, %s109
      %p115 = scmp.eq.s32.totalorder %s14, 0
      %p116 = por %p114, %p115
      %p117 = scmp.ne.s32.totalorder %s106, %s109
      %p118 = scmp.eq.s32.totalorder %s19, 1
      %p119 = por %p117, %p118
      %p120 = scmp.ne.s32.totalorder %s109, %s110
      %p121 = scmp.eq.s32.totalorder %s19, 0
      %p122 = por %p120, %p121
      %p123 = scmp.ne.s32.totalorder %s109, %s110
      %p124 = scmp.eq.s32.totalorder %s20, 1
      %p125 = por %p123, %p124
      %p127 = scmp.ne.s32.totalorder %s110, %s126
      %p128 = scmp.eq.s32.totalorder %s20, 0
      %p129 = por %p127, %p128
      %p130 = scmp.le.s32.totalorder 1, %s14
      %p131 = scmp.lt.s32.totalorder %s14, 3
      %p132 = pnand %p130, %p131
      %p133 = pneg %p132
      // Predicated region
      $region9: #{tpu_custom_call.1} parent=5 // pred_check
        _
      $region10: #{tpu_custom_call.1} parent=5 // pred_check_branch
        %135 = sbr.rel (%p132) target = $region12
      $region11: #{tpu_custom_call.1} parent=5 // pred_region
        %s136 = ssub.s32 %s14, 1
        // Predicated region
        $region13: #{tpu_custom_call.1} parent=11 // pred_check
          %p137 = pneg %p75
        $region14: #{tpu_custom_call.1} parent=11 // pred_check_branch
          %139 = sbr.rel (%p137) target = $region16
        $region15: #{tpu_custom_call.1} parent=11 // pred_region
          %s141 = ssub.s32 4096, 4096
          %142 = vsyncadd [#allocation7], %s141
          %s143 = sshll.u32 [#allocation6], 4
          %s144 = int_to_ptr.vmem [resolvable:$true] %s143
          %149 = dma.hbm_to_vmem [thread:$0]  %s1, 4096, %s144, [#allocation7], 64, 64, 4
        $region16: #{tpu_custom_call.1} parent=11 // pred_fallthru
          _
        // Predicated region
        $region17: #{tpu_custom_call.1} parent=11 // pred_check
          %p150 = pneg %p96
        $region18: #{tpu_custom_call.1} parent=11 // pred_check_branch
          %152 = sbr.rel (%p150) target = $region20
        $region19: #{tpu_custom_call.1} parent=11 // pred_region
          _
        $region20: #{tpu_custom_call.1} parent=11 // pred_fallthru
          _
      $region12: #{tpu_custom_call.1} parent=5 // pred_fallthru
        _
      %p153 = scmp.lt.s32.totalorder %s14, 2
      // Predicated region
      $region21: #{tpu_custom_call.1} parent=5 // pred_check
        %p154 = pneg %p153
      $region22: #{tpu_custom_call.1} parent=5 // pred_check_branch
        %156 = sbr.rel (%p154) target = $region24
      $region23: #{tpu_custom_call.1} parent=5 // pred_region
        // Predicated region
        $region25: #{tpu_custom_call.1} parent=23 // pred_check
          %p157 = pneg %p48
        $region26: #{tpu_custom_call.1} parent=23 // pred_check_branch
          %159 = sbr.rel (%p157) target = $region28
        $region27: #{tpu_custom_call.1} parent=23 // pred_region
          %s160 = sand.u32 %s38, 1
          %s161 = scalar_lea.sflag [#allocation4], %s160
          %s162 = sand.u32 %s38, 1
          %s163 = smul.addr %s162, 256
          %s164 = scalar_lea.vmem [#allocation3], %s163
          %s165 = smul.u32 32, %s21
          %s166 = smul.u32 2, %s22
          %s168 = ssub.s32 4096, 4096
          %169 = vsyncadd %s161, %s168
          %s170 = smul.addr %s165, 4
          %s171 = sadd.s32 %s166, %s170
          %s172 = smul.addr %s171, 64
          %s173 = scalar_lea.hbm %s0, %s172
          %s174 = sshll.u32 %s164, 4
          %s175 = int_to_ptr.vmem [resolvable:$true] %s174
          %180 = dma.hbm_to_vmem [thread:$0]  %s173, 4096, %s175, %s161, 256, 128, 8
        $region28: #{tpu_custom_call.1} parent=23 // pred_fallthru
          _
      $region24: #{tpu_custom_call.1} parent=5 // pred_fallthru
        _
      %p181 = scmp.le.s32.totalorder 1, %s14
      %p182 = scmp.lt.s32.totalorder %s14, 3
      %p183 = pnand %p181, %p182
      %p184 = pneg %p183
      // Predicated region
      $region29: #{tpu_custom_call.1} parent=5 // pred_check
        _
      $region30: #{tpu_custom_call.1} parent=5 // pred_check_branch
        %186 = sbr.rel (%p183) target = $region32
      $region31: #{tpu_custom_call.1} parent=5 // pred_region
        %s187 = ssub.s32 %s14, 1
        %s188 = sand.u32 %s41, 1
        %s189 = scalar_lea.sflag [#allocation4], %s188
        %s190 = sand.u32 %s41, 1
        %s191 = smul.addr %s190, 256
        %s192 = scalar_lea.vmem [#allocation3], %s191
        // Predicated region
        $region33: #{tpu_custom_call.1} parent=31 // pred_check
          %p193 = pneg %p54
        $region34: #{tpu_custom_call.1} parent=31 // pred_check_branch
          %195 = sbr.rel (%p193) target = $region36
        $region35: #{tpu_custom_call.1} parent=31 // pred_region
          %196 = dma.done %s189, 4096
        $region36: #{tpu_custom_call.1} parent=31 // pred_fallthru
          _
        // Predicated region
        $region37: #{tpu_custom_call.1} parent=31 // pred_check
          %p197 = pneg %p75
        $region38: #{tpu_custom_call.1} parent=31 // pred_check_branch
          %199 = sbr.rel (%p197) target = $region40
        $region39: #{tpu_custom_call.1} parent=31 // pred_region
          %200 = dma.done [#allocation7], 4096
        $region40: #{tpu_custom_call.1} parent=31 // pred_fallthru
          _
        %s201 = sand.u32 %s41, 1
        %s202 = scalar_lea.sflag [#allocation4], %s201
        %s203 = sand.u32 %s41, 1
        %s204 = smul.addr %s203, 256
        %s205 = scalar_lea.vmem [#allocation3], %s204
        %p206 = pneg %p54
        %p207 = pneg %p51
        %p208 = pneg %p75
        %p209 = pneg %p72
        %p210 = pneg %p96
        %p211 = pneg %p93
        %p212 = pneg %p122
        %p213 = pneg %p119
        %s214 = smul.u32 32, %s23
        %s215 = smul.u32 2, %s24
        %s216 = smul.u32 32, %s23
        %p218 = scmp.eq.s32.totalorder %s24, 0
        // Predicated region
        $region41: #{tpu_custom_call.1} parent=31 // pred_check
          %p219 = pneg %p218
        $region42: #{tpu_custom_call.1} parent=31 // pred_check_branch
          %221 = sbr.rel (%p219) target = $region44
        $region43: #{tpu_custom_call.1} parent=31 // pred_region
          %v222 = vld [vmem:[%s2] sm:$0x1]
          %v224 = vlaneseq
          %v225 = vshrl.u32 %v224, 7
          %v226 = vsub.s32 0, %v225
          %v227 = vrot.slane %v222, %v226
          %229 = vst [vmem:[#allocation2] sm:$0xff] %v227
          %230 = vst [vmem:[#allocation2 + $0x8] sm:$0xff] %v227
          %231 = vst [vmem:[#allocation2 + $0x10] sm:$0xff] %v227
          %232 = vst [vmem:[#allocation2 + $0x18] sm:$0xff] %v227
          %233 = vst [vmem:[#allocation2 + $0x20] sm:$0xff] %v227
          %234 = vst [vmem:[#allocation2 + $0x28] sm:$0xff] %v227
          %235 = vst [vmem:[#allocation2 + $0x30] sm:$0xff] %v227
          %236 = vst [vmem:[#allocation2 + $0x38] sm:$0xff] %v227
          %237 = vst [vmem:[#allocation2 + $0x40] sm:$0xff] %v227
          %238 = vst [vmem:[#allocation2 + $0x48] sm:$0xff] %v227
          %239 = vst [vmem:[#allocation2 + $0x50] sm:$0xff] %v227
          %240 = vst [vmem:[#allocation2 + $0x58] sm:$0xff] %v227
          %241 = vst [vmem:[#allocation2 + $0x60] sm:$0xff] %v227
          %242 = vst [vmem:[#allocation2 + $0x68] sm:$0xff] %v227
          %243 = vst [vmem:[#allocation2 + $0x70] sm:$0xff] %v227
          %244 = vst [vmem:[#allocation2 + $0x78] sm:$0xff] %v227
          %245 = vst [vmem:[#allocation2 + $0x80] sm:$0xff] %v227
          %246 = vst [vmem:[#allocation2 + $0x88] sm:$0xff] %v227
          %247 = vst [vmem:[#allocation2 + $0x90] sm:$0xff] %v227
          %248 = vst [vmem:[#allocation2 + $0x98] sm:$0xff] %v227
          %249 = vst [vmem:[#allocation2 + $0xa0] sm:$0xff] %v227
          %250 = vst [vmem:[#allocation2 + $0xa8] sm:$0xff] %v227
          %251 = vst [vmem:[#allocation2 + $0xb0] sm:$0xff] %v227
          %252 = vst [vmem:[#allocation2 + $0xb8] sm:$0xff] %v227
          %253 = vst [vmem:[#allocation2 + $0xc0] sm:$0xff] %v227
          %254 = vst [vmem:[#allocation2 + $0xc8] sm:$0xff] %v227
          %255 = vst [vmem:[#allocation2 + $0xd0] sm:$0xff] %v227
          %256 = vst [vmem:[#allocation2 + $0xd8] sm:$0xff] %v227
          %257 = vst [vmem:[#allocation2 + $0xe0] sm:$0xff] %v227
          %258 = vst [vmem:[#allocation2 + $0xe8] sm:$0xff] %v227
          %259 = vst [vmem:[#allocation2 + $0xf0] sm:$0xff] %v227
          %260 = vst [vmem:[#allocation2 + $0xf8] sm:$0xff] %v227
        $region44: #{tpu_custom_call.1} parent=31 // pred_fallthru
          _
        %s261 = smul.u32 %s24, 256
        %s262 = sshra.s32 %s261, 3
        %s263 = sand.u32 %s261, 7
        %s264 = smul.addr %s262, 4
        %s265 = scalar_lea.vmem [#allocation6], %s264
        %v266 = vld [vmem:[%s265] sm:$0xf]
        %v267 = vld [vmem:[%s265 + $0x4] sm:$0xf]
        %v268 = vld [vmem:[%s265 + $0x8] sm:$0xf]
        %v269 = vld [vmem:[%s265 + $0xc] sm:$0xf]
        %v270 = vld [vmem:[%s265 + $0x10] sm:$0xf]
        %v271 = vld [vmem:[%s265 + $0x14] sm:$0xf]
        %v272 = vld [vmem:[%s265 + $0x18] sm:$0xf]
        %v273 = vld [vmem:[%s265 + $0x1c] sm:$0xf]
        %v274 = vld [vmem:[%s265 + $0x20] sm:$0xf]
        %v275 = vld [vmem:[%s265 + $0x24] sm:$0xf]
        %v276 = vld [vmem:[%s265 + $0x28] sm:$0xf]
        %v277 = vld [vmem:[%s265 + $0x2c] sm:$0xf]
        %v278 = vld [vmem:[%s265 + $0x30] sm:$0xf]
        %v279 = vld [vmem:[%s265 + $0x34] sm:$0xf]
        %v280 = vld [vmem:[%s265 + $0x38] sm:$0xf]
        %v281 = vld [vmem:[%s265 + $0x3c] sm:$0xf]
        %v282 = vld [vmem:[%s265 + $0x40] sm:$0xf]
        %v283 = vld [vmem:[%s265 + $0x44] sm:$0xf]
        %v284 = vld [vmem:[%s265 + $0x48] sm:$0xf]
        %v285 = vld [vmem:[%s265 + $0x4c] sm:$0xf]
        %v286 = vld [vmem:[%s265 + $0x50] sm:$0xf]
        %v287 = vld [vmem:[%s265 + $0x54] sm:$0xf]
        %v288 = vld [vmem:[%s265 + $0x58] sm:$0xf]
        %v289 = vld [vmem:[%s265 + $0x5c] sm:$0xf]
        %v290 = vld [vmem:[%s265 + $0x60] sm:$0xf]
        %v291 = vld [vmem:[%s265 + $0x64] sm:$0xf]
        %v292 = vld [vmem:[%s265 + $0x68] sm:$0xf]
        %v293 = vld [vmem:[%s265 + $0x6c] sm:$0xf]
        %v294 = vld [vmem:[%s265 + $0x70] sm:$0xf]
        %v295 = vld [vmem:[%s265 + $0x74] sm:$0xf]
        %v296 = vld [vmem:[%s265 + $0x78] sm:$0xf]
        %v297 = vld [vmem:[%s265 + $0x7c] sm:$0xf]
        %v298 = vld [vmem:[#allocation2] sm:$0xff]
        %v299 = vld [vmem:[#allocation2 + $0x8] sm:$0xff]
        %v300 = vld [vmem:[#allocation2 + $0x10] sm:$0xff]
        %v301 = vld [vmem:[#allocation2 + $0x18] sm:$0xff]
        %v302 = vld [vmem:[#allocation2 + $0x20] sm:$0xff]
        %v303 = vld [vmem:[#allocation2 + $0x28] sm:$0xff]
        %v304 = vld [vmem:[#allocation2 + $0x30] sm:$0xff]
        %v305 = vld [vmem:[#allocation2 + $0x38] sm:$0xff]
        %v306 = vld [vmem:[#allocation2 + $0x40] sm:$0xff]
        %v307 = vld [vmem:[#allocation2 + $0x48] sm:$0xff]
        %v308 = vld [vmem:[#allocation2 + $0x50] sm:$0xff]
        %v309 = vld [vmem:[#allocation2 + $0x58] sm:$0xff]
        %v310 = vld [vmem:[#allocation2 + $0x60] sm:$0xff]
        %v311 = vld [vmem:[#allocation2 + $0x68] sm:$0xff]
        %v312 = vld [vmem:[#allocation2 + $0x70] sm:$0xff]
        %v313 = vld [vmem:[#allocation2 + $0x78] sm:$0xff]
        %v314 = vld [vmem:[#allocation2 + $0x80] sm:$0xff]
        %v315 = vld [vmem:[#allocation2 + $0x88] sm:$0xff]
        %v316 = vld [vmem:[#allocation2 + $0x90] sm:$0xff]
        %v317 = vld [vmem:[#allocation2 + $0x98] sm:$0xff]
        %v318 = vld [vmem:[#allocation2 + $0xa0] sm:$0xff]
        %v319 = vld [vmem:[#allocation2 + $0xa8] sm:$0xff]
        %v320 = vld [vmem:[#allocation2 + $0xb0] sm:$0xff]
        %v321 = vld [vmem:[#allocation2 + $0xb8] sm:$0xff]
        %v322 = vld [vmem:[#allocation2 + $0xc0] sm:$0xff]
        %v323 = vld [vmem:[#allocation2 + $0xc8] sm:$0xff]
        %v324 = vld [vmem:[#allocation2 + $0xd0] sm:$0xff]
        %v325 = vld [vmem:[#allocation2 + $0xd8] sm:$0xff]
        %v326 = vld [vmem:[#allocation2 + $0xe0] sm:$0xff]
        %v327 = vld [vmem:[#allocation2 + $0xe8] sm:$0xff]
        %v328 = vld [vmem:[#allocation2 + $0xf0] sm:$0xff]
        %v329 = vld [vmem:[#allocation2 + $0xf8] sm:$0xff]
        %v330 = vld [vmem:[%s192] sm:$0xff]
        %v331 = vld [vmem:[%s192 + $0x8] sm:$0xff]
        %v332 = vld [vmem:[%s192 + $0x10] sm:$0xff]
        %v333 = vld [vmem:[%s192 + $0x18] sm:$0xff]
        %v334 = vld [vmem:[%s192 + $0x20] sm:$0xff]
        %v335 = vld [vmem:[%s192 + $0x28] sm:$0xff]
        %v336 = vld [vmem:[%s192 + $0x30] sm:$0xff]
        %v337 = vld [vmem:[%s192 + $0x38] sm:$0xff]
        %v338 = vld [vmem:[%s192 + $0x40] sm:$0xff]
        %v339 = vld [vmem:[%s192 + $0x48] sm:$0xff]
        %v340 = vld [vmem:[%s192 + $0x50] sm:$0xff]
        %v341 = vld [vmem:[%s192 + $0x58] sm:$0xff]
        %v342 = vld [vmem:[%s192 + $0x60] sm:$0xff]
        %v343 = vld [vmem:[%s192 + $0x68] sm:$0xff]
        %v344 = vld [vmem:[%s192 + $0x70] sm:$0xff]
        %v345 = vld [vmem:[%s192 + $0x78] sm:$0xff]
        %v346 = vld [vmem:[%s192 + $0x80] sm:$0xff]
        %v347 = vld [vmem:[%s192 + $0x88] sm:$0xff]
        %v348 = vld [vmem:[%s192 + $0x90] sm:$0xff]
        %v349 = vld [vmem:[%s192 + $0x98] sm:$0xff]
        %v350 = vld [vmem:[%s192 + $0xa0] sm:$0xff]
        %v351 = vld [vmem:[%s192 + $0xa8] sm:$0xff]
        %v352 = vld [vmem:[%s192 + $0xb0] sm:$0xff]
        %v353 = vld [vmem:[%s192 + $0xb8] sm:$0xff]
        %v354 = vld [vmem:[%s192 + $0xc0] sm:$0xff]
        %v355 = vld [vmem:[%s192 + $0xc8] sm:$0xff]
        %v356 = vld [vmem:[%s192 + $0xd0] sm:$0xff]
        %v357 = vld [vmem:[%s192 + $0xd8] sm:$0xff]
        %v358 = vld [vmem:[%s192 + $0xe0] sm:$0xff]
        %v359 = vld [vmem:[%s192 + $0xe8] sm:$0xff]
        %v360 = vld [vmem:[%s192 + $0xf0] sm:$0xff]
        %v361 = vld [vmem:[%s192 + $0xf8] sm:$0xff]
        %v394 = vunpack.c.l.b16 %v330
        %v395 = vunpack.c.h.b16 %v330
        %v396 = vunpack.c.l.b16 %v331
        %v397 = vunpack.c.h.b16 %v331
        %v398 = vunpack.c.l.b16 %v332
        %v399 = vunpack.c.h.b16 %v332
        %v400 = vunpack.c.l.b16 %v333
        %v401 = vunpack.c.h.b16 %v333
        %v402 = vunpack.c.l.b16 %v334
        %v403 = vunpack.c.h.b16 %v334
        %v404 = vunpack.c.l.b16 %v335
        %v405 = vunpack.c.h.b16 %v335
        %v406 = vunpack.c.l.b16 %v336
        %v407 = vunpack.c.h.b16 %v336
        %v408 = vunpack.c.l.b16 %v337
        %v409 = vunpack.c.h.b16 %v337
        %v410 = vunpack.c.l.b16 %v338
        %v411 = vunpack.c.h.b16 %v338
        %v412 = vunpack.c.l.b16 %v339
        %v413 = vunpack.c.h.b16 %v339
        %v414 = vunpack.c.l.b16 %v340
        %v415 = vunpack.c.h.b16 %v340
        %v416 = vunpack.c.l.b16 %v341
        %v417 = vunpack.c.h.b16 %v341
        %v418 = vunpack.c.l.b16 %v342
        %v419 = vunpack.c.h.b16 %v342
        %v420 = vunpack.c.l.b16 %v343
        %v421 = vunpack.c.h.b16 %v343
        %v422 = vunpack.c.l.b16 %v344
        %v423 = vunpack.c.h.b16 %v344
        %v424 = vunpack.c.l.b16 %v345
        %v425 = vunpack.c.h.b16 %v345
        %v426 = vunpack.c.l.b16 %v346
        %v427 = vunpack.c.h.b16 %v346
        %v428 = vunpack.c.l.b16 %v347
        %v429 = vunpack.c.h.b16 %v347
        %v430 = vunpack.c.l.b16 %v348
        %v431 = vunpack.c.h.b16 %v348
        %v432 = vunpack.c.l.b16 %v349
        %v433 = vunpack.c.h.b16 %v349
        %v434 = vunpack.c.l.b16 %v350
        %v435 = vunpack.c.h.b16 %v350
        %v436 = vunpack.c.l.b16 %v351
        %v437 = vunpack.c.h.b16 %v351
        %v438 = vunpack.c.l.b16 %v352
        %v439 = vunpack.c.h.b16 %v352
        %v440 = vunpack.c.l.b16 %v353
        %v441 = vunpack.c.h.b16 %v353
        %v442 = vunpack.c.l.b16 %v354
        %v443 = vunpack.c.h.b16 %v354
        %v444 = vunpack.c.l.b16 %v355
        %v445 = vunpack.c.h.b16 %v355
        %v446 = vunpack.c.l.b16 %v356
        %v447 = vunpack.c.h.b16 %v356
        %v448 = vunpack.c.l.b16 %v357
        %v449 = vunpack.c.h.b16 %v357
        %v450 = vunpack.c.l.b16 %v358
        %v451 = vunpack.c.h.b16 %v358
        %v452 = vunpack.c.l.b16 %v359
        %v453 = vunpack.c.h.b16 %v359
        %v454 = vunpack.c.l.b16 %v360
        %v455 = vunpack.c.h.b16 %v360
        %v456 = vunpack.c.l.b16 %v361
        %v457 = vunpack.c.h.b16 %v361
        %v458 = vpack.c.b16 %v396, %v394
        %v459 = vpack.c.b16 %v397, %v395
        %v460 = vpack.c.b16 %v400, %v398
        %v461 = vpack.c.b16 %v401, %v399
        %v462 = vpack.c.b16 %v404, %v402
        %v463 = vpack.c.b16 %v405, %v403
        %v464 = vpack.c.b16 %v408, %v406
        %v465 = vpack.c.b16 %v409, %v407
        %v466 = vpack.c.b16 %v412, %v410
        %v467 = vpack.c.b16 %v413, %v411
        %v468 = vpack.c.b16 %v416, %v414
        %v469 = vpack.c.b16 %v417, %v415
        %v470 = vpack.c.b16 %v420, %v418
        %v471 = vpack.c.b16 %v421, %v419
        %v472 = vpack.c.b16 %v424, %v422
        %v473 = vpack.c.b16 %v425, %v423
        %v474 = vpack.c.b16 %v428, %v426
        %v475 = vpack.c.b16 %v429, %v427
        %v476 = vpack.c.b16 %v432, %v430
        %v477 = vpack.c.b16 %v433, %v431
        %v478 = vpack.c.b16 %v436, %v434
        %v479 = vpack.c.b16 %v437, %v435
        %v480 = vpack.c.b16 %v440, %v438
        %v481 = vpack.c.b16 %v441, %v439
        %v482 = vpack.c.b16 %v444, %v442
        %v483 = vpack.c.b16 %v445, %v443
        %v484 = vpack.c.b16 %v448, %v446
        %v485 = vpack.c.b16 %v449, %v447
        %v486 = vpack.c.b16 %v452, %v450
        %v487 = vpack.c.b16 %v453, %v451
        %v488 = vpack.c.b16 %v456, %v454
        %v489 = vpack.c.b16 %v457, %v455
        %v554 = vunpack.c.l.b16 %v266
        %v555 = vunpack.c.l.b16 %v267
        %v556 = vunpack.c.l.b16 %v268
        %v557 = vunpack.c.l.b16 %v269
        %v558 = vunpack.c.l.b16 %v270
        %v559 = vunpack.c.l.b16 %v271
        %v560 = vunpack.c.l.b16 %v272
        %v561 = vunpack.c.l.b16 %v273
        %v562 = vunpack.c.l.b16 %v274
        %v563 = vunpack.c.l.b16 %v275
        %v564 = vunpack.c.l.b16 %v276
        %v565 = vunpack.c.l.b16 %v277
        %v566 = vunpack.c.l.b16 %v278
        %v567 = vunpack.c.l.b16 %v279
        %v568 = vunpack.c.l.b16 %v280
        %v569 = vunpack.c.l.b16 %v281
        %v570 = vunpack.c.l.b16 %v282
        %v571 = vunpack.c.l.b16 %v283
        %v572 = vunpack.c.l.b16 %v284
        %v573 = vunpack.c.l.b16 %v285
        %v574 = vunpack.c.l.b16 %v286
        %v575 = vunpack.c.l.b16 %v287
        %v576 = vunpack.c.l.b16 %v288
        %v577 = vunpack.c.l.b16 %v289
        %v578 = vunpack.c.l.b16 %v290
        %v579 = vunpack.c.l.b16 %v291
        %v580 = vunpack.c.l.b16 %v292
        %v581 = vunpack.c.l.b16 %v293
        %v582 = vunpack.c.l.b16 %v294
        %v583 = vunpack.c.l.b16 %v295
        %v584 = vunpack.c.l.b16 %v296
        %v585 = vunpack.c.l.b16 %v297
        %v586 = vpack.c.b16 %v555, %v554
        %v587 = vpack.c.b16 %v557, %v556
        %v588 = vpack.c.b16 %v559, %v558
        %v589 = vpack.c.b16 %v561, %v560
        %v590 = vpack.c.b16 %v563, %v562
        %v591 = vpack.c.b16 %v565, %v564
        %v592 = vpack.c.b16 %v567, %v566
        %v593 = vpack.c.b16 %v569, %v568
        %v594 = vpack.c.b16 %v571, %v570
        %v595 = vpack.c.b16 %v573, %v572
        %v596 = vpack.c.b16 %v575, %v574
        %v597 = vpack.c.b16 %v577, %v576
        %v598 = vpack.c.b16 %v579, %v578
        %v599 = vpack.c.b16 %v581, %v580
        %v600 = vpack.c.b16 %v583, %v582
        %v601 = vpack.c.b16 %v585, %v584
        %618 = vmatprep.subr.bf16.mxu0 0
        %619 = vmatpush1.bf16.msra.mxu0 %v593
        %620 = vmatprep.subr.bf16.mxu0 0
        %621 = vmatpush1.bf16.msra.mxu0 %v592
        %622 = vmatprep.subr.bf16.mxu0 0
        %623 = vmatpush1.bf16.msra.mxu0 %v591
        %624 = vmatprep.subr.bf16.mxu0 0
        %625 = vmatpush1.bf16.msra.mxu0 %v590
        %626 = vmatprep.subr.bf16.mxu0 0
        %627 = vmatpush1.bf16.msra.mxu0 %v589
        %628 = vmatprep.subr.bf16.mxu0 0
        %629 = vmatpush1.bf16.msra.mxu0 %v588
        %630 = vmatprep.subr.bf16.mxu0 0
        %631 = vmatpush1.bf16.msra.mxu0 %v587
        %632 = vmatprep.subr.bf16.mxu0 0
        %633 = vmatpush1.bf16.msra.mxu0 %v586
        %634 = vmatprep.subr.bf16.mxu0 0
        %635 = vmatpush2.bf16.msra.mxu0 %v601
        %636 = vmatprep.subr.bf16.mxu0 0
        %637 = vmatpush2.bf16.msra.mxu0 %v600
        %638 = vmatprep.subr.bf16.mxu0 0
        %639 = vmatpush2.bf16.msra.mxu0 %v599
        %640 = vmatprep.subr.bf16.mxu0 0
        %641 = vmatpush2.bf16.msra.mxu0 %v598
        %642 = vmatprep.subr.bf16.mxu0 0
        %643 = vmatpush2.bf16.msra.mxu0 %v597
        %644 = vmatprep.subr.bf16.mxu0 0
        %645 = vmatpush2.bf16.msra.mxu0 %v596
        %646 = vmatprep.subr.bf16.mxu0 0
        %647 = vmatpush2.bf16.msra.mxu0 %v595
        %648 = vmatprep.subr.bf16.mxu0 0
        %649 = vmatpush2.bf16.msra.mxu0 %v594
        %650 = vmatprep.mubr.bf16.mxu0 %v459
        %651 = vmatmul.mubr.bf16.gmra.mxu0 %v458
        %v652 = vpop.f32.mrf.mxu0
        %v653 = vadd.f32 0.0, %v652
        %v654 = vpop.f32.mrf.mxu0
        %v655 = vpop.f32.mrf.mxu0
        %v656 = vadd.f32 0.0, %v655
        %v657 = vpop.f32.mrf.mxu0
        %658 = vmatprep.mubr.bf16.mxu0 %v461
        %659 = vmatmul.mubr.bf16.gmra.mxu0 %v460
        %v660 = vpop.f32.mrf.mxu0
        %v661 = vadd.f32 0.0, %v660
        %v662 = vpop.f32.mrf.mxu0
        %v663 = vpop.f32.mrf.mxu0
        %v664 = vadd.f32 0.0, %v663
        %v665 = vpop.f32.mrf.mxu0
        %666 = vmatprep.mubr.bf16.mxu0 %v463
        %667 = vmatmul.mubr.bf16.gmra.mxu0 %v462
        %v668 = vpop.f32.mrf.mxu0
        %v669 = vadd.f32 0.0, %v668
        %v670 = vpop.f32.mrf.mxu0
        %v671 = vpop.f32.mrf.mxu0
        %v672 = vadd.f32 0.0, %v671
        %v673 = vpop.f32.mrf.mxu0
        %674 = vmatprep.mubr.bf16.mxu0 %v465
        %675 = vmatmul.mubr.bf16.gmra.mxu0 %v464
        %v676 = vpop.f32.mrf.mxu0
        %v677 = vadd.f32 0.0, %v676
        %v678 = vpop.f32.mrf.mxu0
        %v679 = vpop.f32.mrf.mxu0
        %v680 = vadd.f32 0.0, %v679
        %v681 = vpop.f32.mrf.mxu0
        %682 = vmatprep.mubr.bf16.mxu0 %v467
        %683 = vmatmul.mubr.bf16.gmra.mxu0 %v466
        %v684 = vpop.f32.mrf.mxu0
        %v685 = vadd.f32 0.0, %v684
        %v686 = vpop.f32.mrf.mxu0
        %v687 = vpop.f32.mrf.mxu0
        %v688 = vadd.f32 0.0, %v687
        %v689 = vpop.f32.mrf.mxu0
        %690 = vmatprep.mubr.bf16.mxu0 %v469
        %691 = vmatmul.mubr.bf16.gmra.mxu0 %v468
        %v692 = vpop.f32.mrf.mxu0
        %v693 = vadd.f32 0.0, %v692
        %v694 = vpop.f32.mrf.mxu0
        %v695 = vpop.f32.mrf.mxu0
        %v696 = vadd.f32 0.0, %v695
        %v697 = vpop.f32.mrf.mxu0
        %698 = vmatprep.mubr.bf16.mxu0 %v471
        %699 = vmatmul.mubr.bf16.gmra.mxu0 %v470
        %v700 = vpop.f32.mrf.mxu0
        %v701 = vadd.f32 0.0, %v700
        %v702 = vpop.f32.mrf.mxu0
        %v703 = vpop.f32.mrf.mxu0
        %v704 = vadd.f32 0.0, %v703
        %v705 = vpop.f32.mrf.mxu0
        %706 = vmatprep.mubr.bf16.mxu0 %v473
        %707 = vmatmul.mubr.bf16.gmra.mxu0 %v472
        %v708 = vpop.f32.mrf.mxu0
        %v709 = vadd.f32 0.0, %v708
        %v710 = vpop.f32.mrf.mxu0
        %v711 = vpop.f32.mrf.mxu0
        %v712 = vadd.f32 0.0, %v711
        %v713 = vpop.f32.mrf.mxu0
        %714 = vmatprep.mubr.bf16.mxu0 %v475
        %715 = vmatmul.mubr.bf16.gmra.mxu0 %v474
        %v716 = vpop.f32.mrf.mxu0
        %v717 = vadd.f32 0.0, %v716
        %v718 = vpop.f32.mrf.mxu0
        %v719 = vpop.f32.mrf.mxu0
        %v720 = vadd.f32 0.0, %v719
        %v721 = vpop.f32.mrf.mxu0
        %722 = vmatprep.mubr.bf16.mxu0 %v477
        %723 = vmatmul.mubr.bf16.gmra.mxu0 %v476
        %v724 = vpop.f32.mrf.mxu0
        %v725 = vadd.f32 0.0, %v724
        %v726 = vpop.f32.mrf.mxu0
        %v727 = vpop.f32.mrf.mxu0
        %v728 = vadd.f32 0.0, %v727
        %v729 = vpop.f32.mrf.mxu0
        %730 = vmatprep.mubr.bf16.mxu0 %v479
        %731 = vmatmul.mubr.bf16.gmra.mxu0 %v478
        %v732 = vpop.f32.mrf.mxu0
        %v733 = vadd.f32 0.0, %v732
        %v734 = vpop.f32.mrf.mxu0
        %v735 = vpop.f32.mrf.mxu0
        %v736 = vadd.f32 0.0, %v735
        %v737 = vpop.f32.mrf.mxu0
        %738 = vmatprep.mubr.bf16.mxu0 %v481
        %739 = vmatmul.mubr.bf16.gmra.mxu0 %v480
        %v740 = vpop.f32.mrf.mxu0
        %v741 = vadd.f32 0.0, %v740
        %v742 = vpop.f32.mrf.mxu0
        %v743 = vpop.f32.mrf.mxu0
        %v744 = vadd.f32 0.0, %v743
        %v745 = vpop.f32.mrf.mxu0
        %746 = vmatprep.mubr.bf16.mxu0 %v483
        %747 = vmatmul.mubr.bf16.gmra.mxu0 %v482
        %v748 = vpop.f32.mrf.mxu0
        %v749 = vadd.f32 0.0, %v748
        %v750 = vpop.f32.mrf.mxu0
        %v751 = vpop.f32.mrf.mxu0
        %v752 = vadd.f32 0.0, %v751
        %v753 = vpop.f32.mrf.mxu0
        %754 = vmatprep.mubr.bf16.mxu0 %v485
        %755 = vmatmul.mubr.bf16.gmra.mxu0 %v484
        %v756 = vpop.f32.mrf.mxu0
        %v757 = vadd.f32 0.0, %v756
        %v758 = vpop.f32.mrf.mxu0
        %v759 = vpop.f32.mrf.mxu0
        %v760 = vadd.f32 0.0, %v759
        %v761 = vpop.f32.mrf.mxu0
        %762 = vmatprep.mubr.bf16.mxu0 %v487
        %763 = vmatmul.mubr.bf16.gmra.mxu0 %v486
        %v764 = vpop.f32.mrf.mxu0
        %v765 = vadd.f32 0.0, %v764
        %v766 = vpop.f32.mrf.mxu0
        %v767 = vpop.f32.mrf.mxu0
        %v768 = vadd.f32 0.0, %v767
        %v769 = vpop.f32.mrf.mxu0
        %770 = vmatprep.mubr.bf16.mxu0 %v489
        %771 = vmatmul.mubr.bf16.gmra.mxu0 %v488
        %v772 = vpop.f32.mrf.mxu0
        %v773 = vadd.f32 0.0, %v772
        %v774 = vpop.f32.mrf.mxu0
        %v775 = vpop.f32.mrf.mxu0
        %v776 = vadd.f32 0.0, %v775
        %v777 = vpop.f32.mrf.mxu0
        %778 = vdwg.mxu0
        %v779 = vadd.f32 %v298, %v653
        %v780 = vadd.f32 %v299, %v656
        %v781 = vadd.f32 %v300, %v661
        %v782 = vadd.f32 %v301, %v664
        %v783 = vadd.f32 %v302, %v669
        %v784 = vadd.f32 %v303, %v672
        %v785 = vadd.f32 %v304, %v677
        %v786 = vadd.f32 %v305, %v680
        %v787 = vadd.f32 %v306, %v685
        %v788 = vadd.f32 %v307, %v688
        %v789 = vadd.f32 %v308, %v693
        %v790 = vadd.f32 %v309, %v696
        %v791 = vadd.f32 %v310, %v701
        %v792 = vadd.f32 %v311, %v704
        %v793 = vadd.f32 %v312, %v709
        %v794 = vadd.f32 %v313, %v712
        %v795 = vadd.f32 %v314, %v717
        %v796 = vadd.f32 %v315, %v720
        %v797 = vadd.f32 %v316, %v725
        %v798 = vadd.f32 %v317, %v728
        %v799 = vadd.f32 %v318, %v733
        %v800 = vadd.f32 %v319, %v736
        %v801 = vadd.f32 %v320, %v741
        %v802 = vadd.f32 %v321, %v744
        %v803 = vadd.f32 %v322, %v749
        %v804 = vadd.f32 %v323, %v752
        %v805 = vadd.f32 %v324, %v757
        %v806 = vadd.f32 %v325, %v760
        %v807 = vadd.f32 %v326, %v765
        %v808 = vadd.f32 %v327, %v768
        %v809 = vadd.f32 %v328, %v773
        %v810 = vadd.f32 %v329, %v776
        %811 = vst [vmem:[#allocation2] sm:$0xff] %v779
        %812 = vst [vmem:[#allocation2 + $0x8] sm:$0xff] %v780
        %813 = vst [vmem:[#allocation2 + $0x10] sm:$0xff] %v781
        %814 = vst [vmem:[#allocation2 + $0x18] sm:$0xff] %v782
        %815 = vst [vmem:[#allocation2 + $0x20] sm:$0xff] %v783
        %816 = vst [vmem:[#allocation2 + $0x28] sm:$0xff] %v784
        %817 = vst [vmem:[#allocation2 + $0x30] sm:$0xff] %v785
        %818 = vst [vmem:[#allocation2 + $0x38] sm:$0xff] %v786
        %819 = vst [vmem:[#allocation2 + $0x40] sm:$0xff] %v787
        %820 = vst [vmem:[#allocation2 + $0x48] sm:$0xff] %v788
        %821 = vst [vmem:[#allocation2 + $0x50] sm:$0xff] %v789
        %822 = vst [vmem:[#allocation2 + $0x58] sm:$0xff] %v790
        %823 = vst [vmem:[#allocation2 + $0x60] sm:$0xff] %v791
        %824 = vst [vmem:[#allocation2 + $0x68] sm:$0xff] %v792
        %825 = vst [vmem:[#allocation2 + $0x70] sm:$0xff] %v793
        %826 = vst [vmem:[#allocation2 + $0x78] sm:$0xff] %v794
        %827 = vst [vmem:[#allocation2 + $0x80] sm:$0xff] %v795
        %828 = vst [vmem:[#allocation2 + $0x88] sm:$0xff] %v796
        %829 = vst [vmem:[#allocation2 + $0x90] sm:$0xff] %v797
        %830 = vst [vmem:[#allocation2 + $0x98] sm:$0xff] %v798
        %831 = vst [vmem:[#allocation2 + $0xa0] sm:$0xff] %v799
        %832 = vst [vmem:[#allocation2 + $0xa8] sm:$0xff] %v800
        %833 = vst [vmem:[#allocation2 + $0xb0] sm:$0xff] %v801
        %834 = vst [vmem:[#allocation2 + $0xb8] sm:$0xff] %v802
        %835 = vst [vmem:[#allocation2 + $0xc0] sm:$0xff] %v803
        %836 = vst [vmem:[#allocation2 + $0xc8] sm:$0xff] %v804
        %837 = vst [vmem:[#allocation2 + $0xd0] sm:$0xff] %v805
        %838 = vst [vmem:[#allocation2 + $0xd8] sm:$0xff] %v806
        %839 = vst [vmem:[#allocation2 + $0xe0] sm:$0xff] %v807
        %840 = vst [vmem:[#allocation2 + $0xe8] sm:$0xff] %v808
        %841 = vst [vmem:[#allocation2 + $0xf0] sm:$0xff] %v809
        %842 = vst [vmem:[#allocation2 + $0xf8] sm:$0xff] %v810
        %p843 = scmp.eq.s32.totalorder %s24, 1
        // Predicated region
        $region45: #{tpu_custom_call.1} parent=31 // pred_check
          %p844 = pneg %p843
        $region46: #{tpu_custom_call.1} parent=31 // pred_check_branch
          %846 = sbr.rel (%p844) target = $region48
        $region47: #{tpu_custom_call.1} parent=31 // pred_region
          %v847 = vld [vmem:[#allocation2] sm:$0xff]
          %v848 = vld [vmem:[#allocation2 + $0x8] sm:$0xff]
          %v849 = vld [vmem:[#allocation2 + $0x10] sm:$0xff]
          %v850 = vld [vmem:[#allocation2 + $0x18] sm:$0xff]
          %v851 = vld [vmem:[#allocation2 + $0x20] sm:$0xff]
          %v852 = vld [vmem:[#allocation2 + $0x28] sm:$0xff]
          %v853 = vld [vmem:[#allocation2 + $0x30] sm:$0xff]
          %v854 = vld [vmem:[#allocation2 + $0x38] sm:$0xff]
          %v855 = vld [vmem:[#allocation2 + $0x40] sm:$0xff]
          %v856 = vld [vmem:[#allocation2 + $0x48] sm:$0xff]
          %v857 = vld [vmem:[#allocation2 + $0x50] sm:$0xff]
          %v858 = vld [vmem:[#allocation2 + $0x58] sm:$0xff]
          %v859 = vld [vmem:[#allocation2 + $0x60] sm:$0xff]
          %v860 = vld [vmem:[#allocation2 + $0x68] sm:$0xff]
          %v861 = vld [vmem:[#allocation2 + $0x70] sm:$0xff]
          %v862 = vld [vmem:[#allocation2 + $0x78] sm:$0xff]
          %v863 = vld [vmem:[#allocation2 + $0x80] sm:$0xff]
          %v864 = vld [vmem:[#allocation2 + $0x88] sm:$0xff]
          %v865 = vld [vmem:[#allocation2 + $0x90] sm:$0xff]
          %v866 = vld [vmem:[#allocation2 + $0x98] sm:$0xff]
          %v867 = vld [vmem:[#allocation2 + $0xa0] sm:$0xff]
          %v868 = vld [vmem:[#allocation2 + $0xa8] sm:$0xff]
          %v869 = vld [vmem:[#allocation2 + $0xb0] sm:$0xff]
          %v870 = vld [vmem:[#allocation2 + $0xb8] sm:$0xff]
          %v871 = vld [vmem:[#allocation2 + $0xc0] sm:$0xff]
          %v872 = vld [vmem:[#allocation2 + $0xc8] sm:$0xff]
          %v873 = vld [vmem:[#allocation2 + $0xd0] sm:$0xff]
          %v874 = vld [vmem:[#allocation2 + $0xd8] sm:$0xff]
          %v875 = vld [vmem:[#allocation2 + $0xe0] sm:$0xff]
          %v876 = vld [vmem:[#allocation2 + $0xe8] sm:$0xff]
          %v877 = vld [vmem:[#allocation2 + $0xf0] sm:$0xff]
          %v878 = vld [vmem:[#allocation2 + $0xf8] sm:$0xff]
          %879 = vst [vmem:[#allocation8] sm:$0xff] %v847
          %880 = vst [vmem:[#allocation8 + $0x8] sm:$0xff] %v848
          %881 = vst [vmem:[#allocation8 + $0x10] sm:$0xff] %v849
          %882 = vst [vmem:[#allocation8 + $0x18] sm:$0xff] %v850
          %883 = vst [vmem:[#allocation8 + $0x20] sm:$0xff] %v851
          %884 = vst [vmem:[#allocation8 + $0x28] sm:$0xff] %v852
          %885 = vst [vmem:[#allocation8 + $0x30] sm:$0xff] %v853
          %886 = vst [vmem:[#allocation8 + $0x38] sm:$0xff] %v854
          %887 = vst [vmem:[#allocation8 + $0x40] sm:$0xff] %v855
          %888 = vst [vmem:[#allocation8 + $0x48] sm:$0xff] %v856
          %889 = vst [vmem:[#allocation8 + $0x50] sm:$0xff] %v857
          %890 = vst [vmem:[#allocation8 + $0x58] sm:$0xff] %v858
          %891 = vst [vmem:[#allocation8 + $0x60] sm:$0xff] %v859
          %892 = vst [vmem:[#allocation8 + $0x68] sm:$0xff] %v860
          %893 = vst [vmem:[#allocation8 + $0x70] sm:$0xff] %v861
          %894 = vst [vmem:[#allocation8 + $0x78] sm:$0xff] %v862
          %895 = vst [vmem:[#allocation8 + $0x80] sm:$0xff] %v863
          %896 = vst [vmem:[#allocation8 + $0x88] sm:$0xff] %v864
          %897 = vst [vmem:[#allocation8 + $0x90] sm:$0xff] %v865
          %898 = vst [vmem:[#allocation8 + $0x98] sm:$0xff] %v866
          %899 = vst [vmem:[#allocation8 + $0xa0] sm:$0xff] %v867
          %900 = vst [vmem:[#allocation8 + $0xa8] sm:$0xff] %v868
          %901 = vst [vmem:[#allocation8 + $0xb0] sm:$0xff] %v869
          %902 = vst [vmem:[#allocation8 + $0xb8] sm:$0xff] %v870
          %903 = vst [vmem:[#allocation8 + $0xc0] sm:$0xff] %v871
          %904 = vst [vmem:[#allocation8 + $0xc8] sm:$0xff] %v872
          %905 = vst [vmem:[#allocation8 + $0xd0] sm:$0xff] %v873
          %906 = vst [vmem:[#allocation8 + $0xd8] sm:$0xff] %v874
          %907 = vst [vmem:[#allocation8 + $0xe0] sm:$0xff] %v875
          %908 = vst [vmem:[#allocation8 + $0xe8] sm:$0xff] %v876
          %909 = vst [vmem:[#allocation8 + $0xf0] sm:$0xff] %v877
          %910 = vst [vmem:[#allocation8 + $0xf8] sm:$0xff] %v878
        $region48: #{tpu_custom_call.1} parent=31 // pred_fallthru
          _
        // Predicated region
        $region49: #{tpu_custom_call.1} parent=31 // pred_check
          %p911 = pneg %p119
        $region50: #{tpu_custom_call.1} parent=31 // pred_check_branch
          %913 = sbr.rel (%p911) target = $region52
        $region51: #{tpu_custom_call.1} parent=31 // pred_region
          %s914 = smul.u32 32, %s23
          %s916 = ssub.s32 4096, 4096
          %917 = vsyncadd [#allocation5], %s916
          %s918 = smul.addr %s914, 128
          %s919 = scalar_lea.hbm %s3, %s918
          %s920 = sshll.u32 [#allocation8], 4
          %s921 = int_to_ptr.vmem [resolvable:$true] %s920
          %926 = dma.vmem_to_hbm [thread:$0]  %s921, 4096, %s919, [#allocation5], 128, 128, 8
        $region52: #{tpu_custom_call.1} parent=31 // pred_fallthru
          _
        // Predicated region
        $region53: #{tpu_custom_call.1} parent=31 // pred_check
          %p927 = pneg %p119
        $region54: #{tpu_custom_call.1} parent=31 // pred_check_branch
          %929 = sbr.rel (%p927) target = $region56
        $region55: #{tpu_custom_call.1} parent=31 // pred_region
          %930 = dma.done [#allocation5], 4096
        $region56: #{tpu_custom_call.1} parent=31 // pred_fallthru
          _
      $region32: #{tpu_custom_call.1} parent=5 // pred_fallthru
        _
      %p931 = scmp.le.s32.totalorder 2, %s14
      // Predicated region
      $region57: #{tpu_custom_call.1} parent=5 // pred_check
        %p932 = pneg %p931
      $region58: #{tpu_custom_call.1} parent=5 // pred_check_branch
        %934 = sbr.rel (%p932) target = $region60
      $region59: #{tpu_custom_call.1} parent=5 // pred_region
        %s935 = ssub.s32 %s14, 2
      $region60: #{tpu_custom_call.1} parent=5 // pred_fallthru
        _
    $region6: #{tpu_custom_call.1} parent=1 // loop_footer
      %s18 = sadd.s32 1, %s14
    $region7: #{tpu_custom_call.1} parent=1 // loop_footer_branch
      %13 = sbr.rel target = $region3
    $region8: #{tpu_custom_call.1} parent=1 // loop_exit
      _
    %936 = vsyncpa [#allocation4], 1
    %s937 = scalar_lea.sflag [#allocation4], 1
    %938 = vsyncpa %s937, 1
    %939 = vsyncpa [#allocation7], 1
    %940 = vsyncpa [#allocation5], 1
    %s941 = scalar_lea.sflag [#allocation5], 1
    %942 = vsyncpa %s941, 1

</llo_original>
